<compile_context>
chip_gen: v5e
topology: v5e:2x2
jax: 0.10.0
libtpu: 0.0.40
codegen_flags: <defaults>
</compile_context>

<pallas_src>
import math
import functools

import jax
import jax.numpy as jnp
from jax import lax
from jax.experimental import pallas as pl
from jax.experimental.pallas import tpu as pltpu


def _round_up(x, m):
    return ((x + m - 1) // m) * m


def _arcface_kernel(x_ref, w_ref, label_ref, o_ref, *,
                    s, cos_m, sin_m, th, mm, easy_margin, ls_eps,
                    out_features, tile_c, mm_dtype):
    """One (batch-tile, class-tile) block of the ArcFace forward.

    x_ref:     (tB, D)  input features
    w_ref:     (tC, D)  unnormalized class-center weights
    label_ref: (tB, 1)  int32 ground-truth class ids
    o_ref:     (tB, tC) f32 output logits
    """
    eps_sq = 1e-24  # (F.normalize eps = 1e-12) ** 2

    # --- L2-normalize input rows: rsqrt (EUP slot) + one VPU multiply.
    x = x_ref[...].astype(jnp.float32)                              # (tB, D)
    x_ss = jnp.sum(x * x, axis=-1, keepdims=True)                   # (tB, 1)
    xn = x * lax.rsqrt(jnp.maximum(x_ss, eps_sq))                   # (tB, D)

    # --- Per-class 1/||w|| as a lane-dense (1, tC) row, without materializing
    # a normalized (tC, D) weight tile.  The sum-of-squares reduction over D is
    # done with a tiny ones-row matmul so the result lands directly with the
    # class axis on lanes (no transpose / relayout needed).
    w = w_ref[...].astype(jnp.float32)                              # (tC, D)
    ones_rows = jnp.ones((8, w.shape[-1]), jnp.float32)             # (8, D)
    w_ss = lax.dot_general(ones_rows, w * w,
                           dimension_numbers=(((1,), (1,)), ((), ())),
                           preferred_element_type=jnp.float32)      # (8, tC)
    inv_wn = lax.rsqrt(jnp.maximum(w_ss[0:1, :], eps_sq))           # (1, tC)

    # --- cosine: contract the shared last dim directly (no .T), feed the MXU
    # in bf16 (or f32) with f32 accumulation, then apply the per-class 1/||w||
    # as a cheap (tB, tC) column scale.
    raw = lax.dot_general(xn.astype(mm_dtype), w.astype(mm_dtype),
                          dimension_numbers=(((1,), (1,)), ((), ())),
                          preferred_element_type=jnp.float32)       # (tB, tC)
    cosine = raw * inv_wn

    # --- ArcFace margin.  Clamp the sqrt arg: rounding can push |cos| > 1.
    sine = jnp.sqrt(jnp.maximum(1.0 - cosine * cosine, 0.0))
    phi = cosine * cos_m - sine * sin_m
    if easy_margin:
        phi = jnp.where(cosine > 0.0, phi, cosine)
    else:
        phi = jnp.where(cosine > th, phi, cosine - mm)

    # --- one-hot via iota compare, offset by this tile's global class base.
    col0 = pl.program_id(1) * tile_c
    class_ids = lax.broadcasted_iota(jnp.int32, cosine.shape, 1) + col0
    one_hot = (class_ids == label_ref[...]).astype(jnp.float32)     # (tB,1) bcast
    if ls_eps > 0.0:
        one_hot = (1.0 - ls_eps) * one_hot + ls_eps / out_features

    # --- fused blend + scale epilogue.
    o_ref[...] = ((cosine + one_hot * (phi - cosine)) * s).astype(o_ref.dtype)


def arcface_forward(x, weight, label, *, s=30.0, m=0.3, easy_margin=False,
                    ls_eps=0.0, matmul_dtype=jnp.bfloat16,
                    tile_b=128, tile_c=512):
    """x: (B, D) f32, weight: (C, D) f32, label: (B,) int -> (B, C) f32."""
    B, D = x.shape
    C, D2 = weight.shape
    assert D == D2

    # Batch tile: multiple of 8 sublanes.  Class tile: multiple of 128 lanes so
    # the output BlockSpec is lane-dense (unmasked stores).  Tile sizes are
    # modest so double-buffered blocks fit v7x's smaller VMEM budget.
    tB = tile_b if B >= tile_b else _round_up(B, 8)
    tC = tile_c if C >= tile_c else _round_up(C, 128)
    Bp = _round_up(B, tB)
    Cp = _round_up(C, tC)

    xp = x if Bp == B else jnp.pad(x, ((0, Bp - B), (0, 0)))
    wp = weight if Cp == C else jnp.pad(weight, ((0, Cp - C), (0, 0)))
    lp = label.astype(jnp.int32).reshape(B, 1)
    if Bp != B:
        lp = jnp.pad(lp, ((0, Bp - B), (0, 0)))

    kernel = functools.partial(
        _arcface_kernel,
        s=float(s), cos_m=math.cos(m), sin_m=math.sin(m),
        th=math.cos(math.pi - m), mm=math.sin(math.pi - m) * m,
        easy_margin=easy_margin, ls_eps=float(ls_eps),
        out_features=C, tile_c=tC, mm_dtype=matmul_dtype)

    grid = (Bp // tB, Cp // tC)
    cost = pl.CostEstimate(
        flops=2 * Bp * Cp * D + 10 * Bp * Cp,
        transcendentals=Bp * Cp + Bp + Cp,
        bytes_accessed=(Bp * D + Cp * D + Bp * Cp) * 4 + Bp * 4)

    out = pl.pallas_call(
        kernel,
        out_shape=jax.ShapeDtypeStruct((Bp, Cp), jnp.float32),
        grid=grid,
        in_specs=[
            pl.BlockSpec((tB, D), lambda i, j: (i, 0)),   # x: revisit per class tile
            pl.BlockSpec((tC, D), lambda i, j: (j, 0)),   # weight: streamed over C
            pl.BlockSpec((tB, 1), lambda i, j: (i, 0)),   # labels (tiny VMEM block)
        ],
        out_specs=pl.BlockSpec((tB, tC), lambda i, j: (i, j)),
        compiler_params=pltpu.CompilerParams(
            dimension_semantics=("parallel", "parallel"),
            vmem_limit_bytes=32 * 1024 * 1024),
        cost_estimate=cost,
    )(xp, wp, lp)

    if Bp != B or Cp != C:
        out = out[:B, :C]
    return out


def _reference(x, weight, label, *, s=30.0, m=0.3, easy_margin=False, ls_eps=0.0):
    """Pure-JAX reference mirroring the PyTorch forward."""
    eps = 1e-12
    xn = x / jnp.maximum(jnp.linalg.norm(x, axis=-1, keepdims=True), eps)
    wn = weight / jnp.maximum(jnp.linalg.norm(weight, axis=-1, keepdims=True), eps)
    cosine = jnp.einsum("bd,cd->bc", xn, wn, precision=jax.lax.Precision.HIGHEST)
    sine = jnp.sqrt(jnp.maximum(1.0 - cosine ** 2, 0.0))
    phi = cosine * math.cos(m) - sine * math.sin(m)
    if easy_margin:
        phi = jnp.where(cosine > 0, phi, cosine)
    else:
        phi = jnp.where(cosine > math.cos(math.pi - m), phi,
                        cosine - math.sin(math.pi - m) * m)
    one_hot = jax.nn.one_hot(label, weight.shape[0], dtype=jnp.float32)
    if ls_eps > 0:
        one_hot = (1 - ls_eps) * one_hot + ls_eps / weight.shape[0]
    return (one_hot * phi + (1.0 - one_hot) * cosine) * s


if __name__ == "__main__":
    B, in_features, out_features = 8, 32, 16
    key = jax.random.PRNGKey(0)
    kx, kw, kl = jax.random.split(key, 3)

    x = jax.random.normal(kx, (B, in_features), dtype=jnp.float32)
    limit = math.sqrt(6.0 / (in_features + out_features))  # xavier-uniform-like
    weight = jax.random.uniform(kw, (out_features, in_features),
                                minval=-limit, maxval=limit, dtype=jnp.float32)
    label = jax.random.randint(kl, (B,), 0, out_features, dtype=jnp.int32)

    ref = _reference(x, weight, label)

    # Exact-path check: f32 MXU inputs.
    out_f32 = jax.block_until_ready(
        arcface_forward(x, weight, label, matmul_dtype=jnp.float32))
    assert out_f32.shape == (B, out_features)
    assert jnp.allclose(out_f32, ref, atol=2e-3, rtol=2e-3), "f32 path mismatch"

    # Fast path: bf16 MXU inputs, f32 accumulation (default) — looser tolerance.
    out_bf16 = jax.block_until_ready(arcface_forward(x, weight, label))
    assert out_bf16.shape == (B, out_features)
    assert jnp.allclose(out_bf16, ref, atol=0.5, rtol=0.02), "bf16 path mismatch"

    print("KERNEL_OK")
</pallas_src>

<mosaic_0001>
module attributes {stable_mosaic.version = 11 : i64} {
  func.func @_arcface_kernel(%arg0: i32, %arg1: i32, %arg2: memref<8x32xf32, #tpu.memory_space<vmem>>, %arg3: memref<128x32xf32, #tpu.memory_space<vmem>>, %arg4: memref<8x1xi32, #tpu.memory_space<vmem>>, %arg5: memref<8x128xf32, #tpu.memory_space<vmem>>) attributes {dimension_semantics = [#tpu.dimension_semantics<parallel>, #tpu.dimension_semantics<parallel>], iteration_bounds = array<i64: 1, 1>, scalar_prefetch = 0 : i64, scratch_operands = 0 : i64, tpu.core_type = #tpu.core_type<tc>, window_params = [{transform_indices = @transform_0, window_bounds = array<i64: 8, 32>}, {transform_indices = @transform_1, window_bounds = array<i64: 128, 32>}, {transform_indices = @transform_2, window_bounds = array<i64: 8, 1>}, {transform_indices = @transform_3, window_bounds = array<i64: 8, 128>}]} {
    %c0 = arith.constant 0 : index
    %c0_0 = arith.constant 0 : index
    %0 = vector.load %arg2[%c0, %c0_0] : memref<8x32xf32, #tpu.memory_space<vmem>>, vector<8x32xf32>
    %1 = arith.mulf %0, %0 : vector<8x32xf32>
    %cst = arith.constant dense<0.000000e+00> : vector<8xf32>
    %2 = vector.multi_reduction <add>, %1, %cst [1] : vector<8x32xf32> to vector<8xf32>
    %3 = vector.shape_cast %2 : vector<8xf32> to vector<8x1xf32>
    %cst_1 = arith.constant 1.000000e-24 : f32
    %4 = vector.broadcast %cst_1 : f32 to vector<8x1xf32>
    %5 = arith.maximumf %3, %4 : vector<8x1xf32>
    %6 = math.rsqrt %5 : vector<8x1xf32>
    %7 = vector.broadcast %6 : vector<8x1xf32> to vector<8x32xf32>
    %8 = arith.mulf %0, %7 : vector<8x32xf32>
    %c0_2 = arith.constant 0 : index
    %c0_3 = arith.constant 0 : index
    %9 = vector.load %arg3[%c0_2, %c0_3] : memref<128x32xf32, #tpu.memory_space<vmem>>, vector<128x32xf32>
    %cst_4 = arith.constant 1.000000e+00 : f32
    %10 = vector.broadcast %cst_4 : f32 to vector<8x32xf32>
    %11 = arith.mulf %9, %9 : vector<128x32xf32>
    %cst_5 = arith.constant dense<0.000000e+00> : vector<8x128xf32>
    %12 = tpu.matmul %10, %11, %cst_5 {dimension_numbers = #tpu.dot_dimension_numbers<[1], [1], [0], [0], [0, 0, 1, 0], [], []>} : vector<8x32xf32>, vector<128x32xf32>, vector<8x128xf32> -> vector<8x128xf32>
    %13 = vector.extract_strided_slice %12 {offsets = [0, 0], sizes = [1, 128], strides = [1, 1]} : vector<8x128xf32> to vector<1x128xf32>
    %cst_6 = arith.constant 1.000000e-24 : f32
    %14 = vector.broadcast %cst_6 : f32 to vector<1x128xf32>
    %15 = arith.maximumf %13, %14 : vector<1x128xf32>
    %16 = math.rsqrt %15 : vector<1x128xf32>
    %cst_7 = arith.constant dense<0.000000e+00> : vector<8x128xf32>
    %17 = tpu.matmul %8, %9, %cst_7 {dimension_numbers = #tpu.dot_dimension_numbers<[1], [1], [0], [0], [0, 0, 1, 0], [], []>} : vector<8x32xf32>, vector<128x32xf32>, vector<8x128xf32> -> vector<8x128xf32>
    %18 = vector.broadcast %16 : vector<1x128xf32> to vector<8x128xf32>
    %19 = arith.mulf %17, %18 : vector<8x128xf32>
    %20 = arith.mulf %19, %19 : vector<8x128xf32>
    %cst_8 = arith.constant 1.000000e+00 : f32
    %21 = vector.broadcast %cst_8 : f32 to vector<8x128xf32>
    %22 = arith.subf %21, %20 : vector<8x128xf32>
    %cst_9 = arith.constant 0.000000e+00 : f32
    %23 = vector.broadcast %cst_9 : f32 to vector<8x128xf32>
    %24 = arith.maximumf %22, %23 : vector<8x128xf32>
    %25 = math.sqrt %24 : vector<8x128xf32>
    %cst_10 = arith.constant 0.955336511 : f32
    %26 = vector.broadcast %cst_10 : f32 to vector<8x128xf32>
    %27 = arith.mulf %19, %26 : vector<8x128xf32>
    %cst_11 = arith.constant 0.295520216 : f32
    %28 = vector.broadcast %cst_11 : f32 to vector<8x128xf32>
    %29 = arith.mulf %25, %28 : vector<8x128xf32>
    %30 = arith.subf %27, %29 : vector<8x128xf32>
    %cst_12 = arith.constant -0.955336511 : f32
    %31 = vector.broadcast %cst_12 : f32 to vector<8x128xf32>
    %32 = arith.cmpf ogt, %19, %31 : vector<8x128xf32>
    %cst_13 = arith.constant 0.0886560603 : f32
    %33 = vector.broadcast %cst_13 : f32 to vector<8x128xf32>
    %34 = arith.subf %19, %33 : vector<8x128xf32>
    %35 = arith.select %32, %30, %34 : vector<8x128xi1>, vector<8x128xf32>
    %c128_i32 = arith.constant 128 : i32
    %36 = arith.muli %arg1, %c128_i32 : i32
    %37 = tpu.iota {dimensions = array<i32: 1>} : vector<8x128xi32>
    %38 = vector.broadcast %36 : i32 to vector<8x128xi32>
    %39 = arith.addi %37, %38 : vector<8x128xi32>
    %c0_14 = arith.constant 0 : index
    %c0_15 = arith.constant 0 : index
    %40 = vector.load %arg4[%c0_14, %c0_15] : memref<8x1xi32, #tpu.memory_space<vmem>>, vector<8x1xi32>
    %41 = vector.broadcast %40 : vector<8x1xi32> to vector<8x128xi32>
    %42 = arith.cmpi eq, %39, %41 : vector<8x128xi32>
    %43 = arith.extui %42 : vector<8x128xi1> to vector<8x128xi32>
    %44 = arith.sitofp %43 : vector<8x128xi32> to vector<8x128xf32>
    %45 = arith.subf %35, %19 : vector<8x128xf32>
    %46 = arith.mulf %44, %45 : vector<8x128xf32>
    %47 = arith.addf %19, %46 : vector<8x128xf32>
    %cst_16 = arith.constant 3.000000e+01 : f32
    %48 = vector.broadcast %cst_16 : f32 to vector<8x128xf32>
    %49 = arith.mulf %47, %48 : vector<8x128xf32>
    %c0_17 = arith.constant 0 : index
    %c0_18 = arith.constant 0 : index
    %50 = vector.load %arg5[%c0_17, %c0_18] : memref<8x128xf32, #tpu.memory_space<vmem>>, vector<8x128xf32>
    tpu.vector_store %arg5[%c0_17, %c0_18], %49 {strides = array<i32>} : memref<8x128xf32, #tpu.memory_space<vmem>>, vector<8x128xf32>,
    return
  }
  func.func @transform_0(%arg0: i32, %arg1: i32) -> (i32, i32) {
    %c0_i32 = arith.constant 0 : i32
    %c0_i32_0 = arith.constant 0 : i32
    return %arg0, %c0_i32 : i32, i32
  }
  func.func @transform_1(%arg0: i32, %arg1: i32) -> (i32, i32) {
    %c0_i32 = arith.constant 0 : i32
    %c0_i32_0 = arith.constant 0 : i32
    return %arg1, %c0_i32 : i32, i32
  }
  func.func @transform_2(%arg0: i32, %arg1: i32) -> (i32, i32) {
    %c0_i32 = arith.constant 0 : i32
    %c0_i32_0 = arith.constant 0 : i32
    return %arg0, %c0_i32 : i32, i32
  }
  func.func @transform_3(%arg0: i32, %arg1: i32) -> (i32, i32) {
    %c0_i32 = arith.constant 0 : i32
    return %arg0, %arg1 : i32, i32
  }
}

</mosaic_0001>

<llo_original>
// kernel: tpu_custom_call.1
$region0: #{tpu_custom_call.1}
  #allocation0 [shape = 'u32[]', space=smem, size = 0x4, offset = 0x4, fixed_abs, tag = 'smem constant byte address 0x4 - core index']
  #allocation1 [shape = 'u32[72,128]{1,0:T(1,128)}', space=vmem, size = 0x9000, scoped, tag = 'internal scratch']
  %s0 = inlined_call_operand.vmem [shape: f32[8,32], index: 0, kind: input, shape index: {}]
  %s1 = inlined_call_operand.vmem [shape: f32[128,32], index: 1, kind: input, shape index: {}]
  %s2 = inlined_call_operand.vmem [shape: s32[8,1], index: 2, kind: input, shape index: {}]
  %s3 = inlined_call_operand.hbm [shape: f32[8,128], index: 3, kind: output, shape index: {}]
  %s4 = sld [smem:[#allocation0]]
  $region22: #{tpu_custom_call.1} parent=0
    _
  %s6 = ssub.s32 1, %s4
  %s7 = scalar_select 0, %s6, %s4
  $region1: #{tpu_custom_call.1} parent=0
    #allocation2 [shape = 'u8[4096]{0}', space=vmem, size = 0x1000, scoped, tag = 'output window, operand 0, single buffered']
    #allocation3 [shape = 's32[1]{0}', space=sflag, size = 0x4, scoped, tag = 'scoped memory for tpu_custom_call.1']
    %8 = vsyncpa [#allocation3], 0
    // Predicated region
    $region2: #{tpu_custom_call.1} parent=1 // pred_check
      _
    $region3: #{tpu_custom_call.1} parent=1 // pred_check_branch
      %10 = sbr.rel (0) target = $region5
    $region4: #{tpu_custom_call.1} parent=1 // pred_region
      _
    $region5: #{tpu_custom_call.1} parent=1 // pred_fallthru
      _
    // Predicated region
    $region6: #{tpu_custom_call.1} parent=1 // pred_check
      _
    $region7: #{tpu_custom_call.1} parent=1 // pred_check_branch
      %12 = sbr.rel (0) target = $region9
    $region8: #{tpu_custom_call.1} parent=1 // pred_region
      _
    $region9: #{tpu_custom_call.1} parent=1 // pred_fallthru
      _
    // Predicated region
    $region10: #{tpu_custom_call.1} parent=1 // pred_check
      _
    $region11: #{tpu_custom_call.1} parent=1 // pred_check_branch
      %14 = sbr.rel (0) target = $region13
    $region12: #{tpu_custom_call.1} parent=1 // pred_region
      _
    $region13: #{tpu_custom_call.1} parent=1 // pred_fallthru
      _
    %v15 = vld [vmem:[%s0] sm:$0xff]
    %v16 = vmul.f32 %v15, %v15
    %vm17 = vcmask 261120
    %v18 = vsel %vm17, %v16, 0.0
    %19 = vadd.xlane.f32.xlu0 %v18
    %v20 = vpop.xlane.xlu0 %19
    %v21 = vmax.f32 %v20, 1e-24
    %v22 = vrsqrt.pop %v21
    %v23 = vmul.f32 %v22, %v21
    %v24 = vmul.f32 %v23, %v22
    %v25 = vmul.f32 0.5, %v24
    %v26 = vsub.f32 1.5, %v25
    %v27 = vmul.f32 %v22, %v26
    %vm28 = vweird.f32 %v21
    %vm29 = vweird.f32 %v22
    %vm30 = vmor %vm28, %vm29
    %v31 = vsel %vm30, %v22, %v27
    %v32 = vmul.f32 %v15, %v31
    %v33 = vld [vmem:[%s1] sm:$0xff]
    %v34 = vld [vmem:[%s1 + $0x8] sm:$0xff]
    %v35 = vld [vmem:[%s1 + $0x10] sm:$0xff]
    %v36 = vld [vmem:[%s1 + $0x18] sm:$0xff]
    %v37 = vld [vmem:[%s1 + $0x20] sm:$0xff]
    %v38 = vld [vmem:[%s1 + $0x28] sm:$0xff]
    %v39 = vld [vmem:[%s1 + $0x30] sm:$0xff]
    %v40 = vld [vmem:[%s1 + $0x38] sm:$0xff]
    %v41 = vld [vmem:[%s1 + $0x40] sm:$0xff]
    %v42 = vld [vmem:[%s1 + $0x48] sm:$0xff]
    %v43 = vld [vmem:[%s1 + $0x50] sm:$0xff]
    %v44 = vld [vmem:[%s1 + $0x58] sm:$0xff]
    %v45 = vld [vmem:[%s1 + $0x60] sm:$0xff]
    %v46 = vld [vmem:[%s1 + $0x68] sm:$0xff]
    %v47 = vld [vmem:[%s1 + $0x70] sm:$0xff]
    %v48 = vld [vmem:[%s1 + $0x78] sm:$0xff]
    %v49 = vmul.f32 %v33, %v33
    %v50 = vmul.f32 %v34, %v34
    %v51 = vmul.f32 %v35, %v35
    %v52 = vmul.f32 %v36, %v36
    %v53 = vmul.f32 %v37, %v37
    %v54 = vmul.f32 %v38, %v38
    %v55 = vmul.f32 %v39, %v39
    %v56 = vmul.f32 %v40, %v40
    %v57 = vmul.f32 %v41, %v41
    %v58 = vmul.f32 %v42, %v42
    %v59 = vmul.f32 %v43, %v43
    %v60 = vmul.f32 %v44, %v44
    %v61 = vmul.f32 %v45, %v45
    %v62 = vmul.f32 %v46, %v46
    %v63 = vmul.f32 %v47, %v47
    %v64 = vmul.f32 %v48, %v48
    %v66 = vsel %vm17, 1.0, 0
    %v69 = vsel %vm17, %v49, 0
    %v72 = vsel %vm17, %v50, 0
    %v75 = vsel %vm17, %v51, 0
    %v78 = vsel %vm17, %v52, 0
    %v81 = vsel %vm17, %v53, 0
    %v84 = vsel %vm17, %v54, 0
    %v87 = vsel %vm17, %v55, 0
    %v90 = vsel %vm17, %v56, 0
    %v93 = vsel %vm17, %v57, 0
    %v96 = vsel %vm17, %v58, 0
    %v99 = vsel %vm17, %v59, 0
    %v102 = vsel %vm17, %v60, 0
    %v105 = vsel %vm17, %v61, 0
    %v108 = vsel %vm17, %v62, 0
    %v111 = vsel %vm17, %v63, 0
    %v114 = vsel %vm17, %v64, 0
    %116 = vmatpush.xpose.msra.mxu0 %v114
    %117 = vmatpush.xpose.msra.mxu0 %v111
    %118 = vmatpush.xpose.msra.mxu0 %v108
    %119 = vmatpush.xpose.msra.mxu0 %v105
    %120 = vmatpush.xpose.msra.mxu0 %v102
    %121 = vmatpush.xpose.msra.mxu0 %v99
    %122 = vmatpush.xpose.msra.mxu0 %v96
    %123 = vmatpush.xpose.msra.mxu0 %v93
    %124 = vmatpush.xpose.msra.mxu0 %v90
    %125 = vmatpush.xpose.msra.mxu0 %v87
    %126 = vmatpush.xpose.msra.mxu0 %v84
    %127 = vmatpush.xpose.msra.mxu0 %v81
    %128 = vmatpush.xpose.msra.mxu0 %v78
    %129 = vmatpush.xpose.msra.mxu0 %v75
    %130 = vmatpush.xpose.msra.mxu0 %v72
    %131 = vmatpush.xpose.msra.mxu0 %v69
    %132 = vmatmul.f32.gmra.mxu0 %v66
    %v133 = vpop.f32.mrf.mxu0
    %v134 = vadd.f32 0.0, %v133
    %135 = vdwg.mxu0
    %v136 = vmax.f32 %v134, 1e-24
    %v137 = vrsqrt.pop %v136
    %v138 = vmul.f32 %v137, %v136
    %v139 = vmul.f32 %v138, %v137
    %v140 = vmul.f32 0.5, %v139
    %v141 = vsub.f32 1.5, %v140
    %v142 = vmul.f32 %v137, %v141
    %vm143 = vweird.f32 %v136
    %vm144 = vweird.f32 %v137
    %vm145 = vmor %vm143, %vm144
    %v146 = vsel %vm145, %v137, %v142
    %v148 = vsel %vm17, %v32, 0
    %v151 = vsel %vm17, %v33, 0
    %v154 = vsel %vm17, %v34, 0
    %v157 = vsel %vm17, %v35, 0
    %v160 = vsel %vm17, %v36, 0
    %v163 = vsel %vm17, %v37, 0
    %v166 = vsel %vm17, %v38, 0
    %v169 = vsel %vm17, %v39, 0
    %v172 = vsel %vm17, %v40, 0
    %v175 = vsel %vm17, %v41, 0
    %v178 = vsel %vm17, %v42, 0
    %v181 = vsel %vm17, %v43, 0
    %v184 = vsel %vm17, %v44, 0
    %v187 = vsel %vm17, %v45, 0
    %v190 = vsel %vm17, %v46, 0
    %v193 = vsel %vm17, %v47, 0
    %v196 = vsel %vm17, %v48, 0
    %198 = vmatpush.xpose.msra.mxu0 %v196
    %199 = vmatpush.xpose.msra.mxu0 %v193
    %200 = vmatpush.xpose.msra.mxu0 %v190
    %201 = vmatpush.xpose.msra.mxu0 %v187
    %202 = vmatpush.xpose.msra.mxu0 %v184
    %203 = vmatpush.xpose.msra.mxu0 %v181
    %204 = vmatpush.xpose.msra.mxu0 %v178
    %205 = vmatpush.xpose.msra.mxu0 %v175
    %206 = vmatpush.xpose.msra.mxu0 %v172
    %207 = vmatpush.xpose.msra.mxu0 %v169
    %208 = vmatpush.xpose.msra.mxu0 %v166
    %209 = vmatpush.xpose.msra.mxu0 %v163
    %210 = vmatpush.xpose.msra.mxu0 %v160
    %211 = vmatpush.xpose.msra.mxu0 %v157
    %212 = vmatpush.xpose.msra.mxu0 %v154
    %213 = vmatpush.xpose.msra.mxu0 %v151
    %214 = vmatmul.f32.gmra.mxu0 %v148
    %v215 = vpop.f32.mrf.mxu0
    %v216 = vadd.f32 0.0, %v215
    %217 = vdwg.mxu0
    %v218 = vperm.slane %v146, 0
    %v219 = vmul.f32 %v216, %v218
    %v220 = vmul.f32 %v219, %v219
    %v221 = vsub.f32 1.0, %v220
    %v222 = vmax.f32 %v221, 0.0
    %v223 = vrsqrt.pop %v222
    %v224 = vmul.f32 %v223, %v222
    %v225 = vmul.f32 %v224, %v223
    %v226 = vmul.f32 0.5, %v225
    %v227 = vsub.f32 1.5, %v226
    %v228 = vmul.f32 %v223, %v227
    %v229 = vmul.f32 %v222, %v228
    %vm230 = vcmp.eq.f32.partialorder %v222, inf
    %v231 = vsel %vm230, %v222, %v229
    %vm232 = vcmp.eq.f32.partialorder %v222, 0.0
    %v233 = vand.u32 %v222, 2147483648
    %v234 = vsel %vm232, %v233, %v231
    %v235 = vmul.f32 %v219, 0.9553365
    %v236 = vmul.f32 %v234, 0.29552022
    %v237 = vsub.f32 %v235, %v236
    %vm238 = vcmp.gt.f32.partialorder %v219, -0.9553365
    %v239 = vsub.f32 %v219, 0.08865606
    %v240 = vsel %vm238, %v237, %v239
    %s241 = smul.u32 0, 128
    %v242 = vlaneseq
    %v243 = vand.u32 %v242, 127
    %v244 = vstv %s241
    %v245 = vadd.s32 %v243, %v244
    %v246 = vld [vmem:[%s2] sm:$0xff]
    %247 = vset.pattern.permute.xlu0 0
    %248 = vperm.xlu0 %247, %v246
    %v249 = vpop.permute.xlu0 %248
    %vm250 = vcmp.eq.s32.totalorder %v245, %v249
    %v251 = vsel %vm250, 1, 0
    %v252 = vcvt.s32.f32 %v251
    %v253 = vsub.f32 %v240, %v219
    %v254 = vmul.f32 %v252, %v253
    %v255 = vadd.f32 %v219, %v254
    %v256 = vmul.f32 %v255, 30.0
    %257 = vst [vmem:[#allocation2] sm:$0xff] %v256
    // Predicated region
    $region14: #{tpu_custom_call.1} parent=1 // pred_check
      _
    $region15: #{tpu_custom_call.1} parent=1 // pred_check_branch
      %259 = sbr.rel (0) target = $region17
    $region16: #{tpu_custom_call.1} parent=1 // pred_region
      %261 = vsyncadd [#allocation3], 0
      %s263 = sshll.u32 [#allocation2], 4
      %s264 = int_to_ptr.vmem [resolvable:$true] %s263
      %s265 = sshll.u32 %s3, 4
      %s266 = int_to_ptr.hbm [resolvable:$true] %s265
      %268 = dma.vmem_to_hbm [thread:$0]  %s264, 128, %s266, [#allocation3]
    $region17: #{tpu_custom_call.1} parent=1 // pred_fallthru
      _
    // Predicated region
    $region18: #{tpu_custom_call.1} parent=1 // pred_check
      _
    $region19: #{tpu_custom_call.1} parent=1 // pred_check_branch
      %270 = sbr.rel (0) target = $region21
    $region20: #{tpu_custom_call.1} parent=1 // pred_region
      %272 = dma.done [#allocation3], 128
    $region21: #{tpu_custom_call.1} parent=1 // pred_fallthru
      _
    %273 = vsyncpa [#allocation3], 1

</llo_original>
